<compile_context>
chip_gen: v7x
topology: tpu7x:2x2x1
jax: 0.10.0
libtpu: 0.0.40
codegen_flags: <defaults>
</compile_context>

<pallas_src>
import jax
import jax.numpy as jnp
from jax import lax
from jax.experimental import pallas as pl
from jax.experimental.pallas import tpu as pltpu


# ---------------------------------------------------------------------------
# Kernels
# ---------------------------------------------------------------------------
def _encoder_resident_kernel(ids_ref, table_ref, mean_ref, inv_std_ref, out_ref):
    """Gather tile_n rows from the VMEM-resident table and normalize them.

    ids_ref:     (N_pad,) int32 SMEM  token ids (scalar-prefetched)
    table_ref:   (V, D)   VMEM        raw embedding table (grid-invariant block)
    mean_ref:    (1, D)   VMEM        per-feature mean over used ids
    inv_std_ref: (1, D)   VMEM        1 / per-feature std (unbiased)
    out_ref:     (tile_n, D) VMEM     normalized embeddings for this tile
    """
    tile_n = out_ref.shape[0]
    base = pl.program_id(0) * tile_n

    # Hoist the (1, D) stats loads out of the row loop.
    mean = mean_ref[...]
    inv_std = inv_std_ref[...]

    def body(r, carry):
        tok = ids_ref[base + r]                       # scalar id from SMEM
        row = table_ref[pl.ds(tok, 1), :]             # (1, D) dynamic row read
        out_ref[pl.ds(r, 1), :] = ((row - mean) * inv_std).astype(out_ref.dtype)
        return carry

    # Unrolled so index math / loads / stores of neighbouring rows co-issue.
    lax.fori_loop(0, tile_n, body, 0, unroll=8)


def _encoder_dma_gather_kernel(ids_ref, emb_hbm, mean_ref, inv_std_ref, out_ref,
                               buf, sem):
    """Large-vocab fallback: DMA-gather tile_n HBM rows with a deep ring.

    emb_hbm: (V, D) raw table left in HBM (memory_space=pl.ANY)
    buf:     (tile_n, D) VMEM landing buffer
    sem:     (lookahead,) DMA semaphores (ring of in-flight row copies)
    """
    tile_n = out_ref.shape[0]
    lookahead = sem.shape[0]
    n_total = ids_ref.shape[0]
    base = pl.program_id(0) * tile_n

    def row_copy(tok, r):
        # Shared helper so .start() and .wait() always see the exact same
        # src/dst/semaphore descriptor.
        return pltpu.make_async_copy(
            emb_hbm.at[pl.ds(tok, 1)],                # (1, D) HBM source row
            buf.at[pl.ds(r, 1)],                      # (1, D) VMEM dest row
            sem.at[r % lookahead],
        )

    # Prime the ring with `lookahead` outstanding row DMAs.
    def prime(r, carry):
        row_copy(ids_ref[base + r], r).start()
        return carry

    lax.fori_loop(0, lookahead, prime, 0, unroll=True)

    # Wait row r, then refill the freed semaphore slot with row r + lookahead.
    def wait_refill(r, carry):
        # SMEM id reads happen BEFORE the wait: .wait() breaks sst->sld
        # forwarding, so hoisting keeps the scalar path flowing.
        tok_r = ids_ref[base + r]
        nxt_idx = jnp.minimum(base + r + lookahead, n_total - 1)
        tok_next = ids_ref[nxt_idx]

        row_copy(tok_r, r).wait()

        @pl.when(r + lookahead < tile_n)
        def _():
            row_copy(tok_next, r + lookahead).start()

        return carry

    lax.fori_loop(0, tile_n, wait_refill, 0, unroll=8)

    # Fused normalization on the gathered tile: one lane-dense full-tile store.
    out_ref[...] = ((buf[...] - mean_ref[...]) * inv_std_ref[...]).astype(out_ref.dtype)


# ---------------------------------------------------------------------------
# Wrapper
# ---------------------------------------------------------------------------
def _round_up(x, m):
    return ((x + m - 1) // m) * m


def _vmem_capacity_bytes(default=64 * 1024 * 1024):
    """Physical per-core VMEM; gates the resident-table fast path.

    v5e/v6e: 128 MiB, v7x: 64 MiB.  Falls back to the smallest (64 MiB) if the
    query is unavailable so the gate stays conservative.
    """
    try:
        info = pltpu.get_tpu_info()
        cap = getattr(info, "vmem_capacity_bytes", None)
        if cap:
            return int(cap)
    except Exception:
        pass
    return default


def encoder_forward(input_ids, emb, emb_mean, emb_std, *,
                    tile_n=256, lookahead=32, force_dma_gather=False):
    """Pallas equivalent of Encoder.forward(input_ids)."""
    orig_shape = tuple(input_ids.shape)
    V, D = emb.shape
    N = 1
    for s in orig_shape:
        N *= int(s)
    itemsize = emb.dtype.itemsize

    # Tile sizing: keep tiles big (amortize per-step overhead, lane/sublane
    # dense writeback), but give small inputs >= 2 grid steps so both v7x
    # TensorCores get work, and never over-pad tiny batches.
    tile_n = int(min(tile_n, max(8, _round_up(pl.cdiv(N, 2), 8))))
    tile_n = max(8, (tile_n // 8) * 8)
    n_pad = _round_up(N, tile_n)
    num_tiles = n_pad // tile_n

    # Clamp ids so a gather can never index outside the table (PyTorch would
    # raise on OOB ids -- intentional divergence); pad with id 0 (a valid row).
    ids = jnp.clip(input_ids.reshape(-1).astype(jnp.int32), 0, V - 1)
    ids = jnp.pad(ids, (0, n_pad - N))

    mean = emb_mean.reshape(1, D).astype(emb.dtype)
    # NOTE: a zero per-feature std yields inf here and NaN/Inf outputs, exactly
    # like the reference division would.
    inv_std = (1.0 / emb_std.reshape(1, D)).astype(emb.dtype)

    table_bytes = V * D * itemsize
    out_tile_bytes = tile_n * D * itemsize
    vmem_cap = _vmem_capacity_bytes()
    # Budget 2x the table (the pipeline may double-buffer even a grid-invariant
    # block) + pipelined output tiles + headroom; use at most 3/4 of VMEM.
    resident_need = 2 * table_bytes + 4 * out_tile_bytes + (2 << 20)
    use_resident = (not force_dma_gather) and (resident_need <= (vmem_cap * 3) // 4)

    cost = pl.CostEstimate(
        flops=2 * n_pad * D,
        transcendentals=0,
        bytes_accessed=(2 * n_pad * D * itemsize + n_pad * 4
                        + (table_bytes if use_resident else 0)),
    )

    if use_resident:
        # ---------------- resident-table fast path ----------------
        vmem_limit = int(min(vmem_cap, max(resident_need + (4 << 20), 32 << 20)))
        grid_spec = pltpu.PrefetchScalarGridSpec(
            num_scalar_prefetch=1,                             # ids -> SMEM
            grid=(num_tiles,),
            in_specs=[
                pl.BlockSpec((V, D), lambda i, ids: (0, 0)),   # table, VMEM-resident
                pl.BlockSpec((1, D), lambda i, ids: (0, 0)),   # mean
                pl.BlockSpec((1, D), lambda i, ids: (0, 0)),   # 1/std
            ],
            out_specs=pl.BlockSpec((tile_n, D), lambda i, ids: (i, 0)),
        )
        out = pl.pallas_call(
            _encoder_resident_kernel,
            out_shape=jax.ShapeDtypeStruct((n_pad, D), emb.dtype),
            grid_spec=grid_spec,
            compiler_params=pltpu.CompilerParams(
                dimension_semantics=("parallel",),
                vmem_limit_bytes=vmem_limit,
            ),
            cost_estimate=cost,
        )(ids, emb, mean, inv_std)
    else:
        # ---------------- HBM DMA-gather fallback (huge vocab) ----------------
        # TODO(synk): on v7x a BERT-sized table could instead stay resident as a
        # bf16 copy (~half the bytes) and be upcast per gathered tile.
        lookahead = max(1, min(int(lookahead), tile_n))
        grid_spec = pltpu.PrefetchScalarGridSpec(
            num_scalar_prefetch=1,
            grid=(num_tiles,),
            in_specs=[
                pl.BlockSpec(memory_space=pl.ANY),             # table stays in HBM
                pl.BlockSpec((1, D), lambda i, ids: (0, 0)),   # mean
                pl.BlockSpec((1, D), lambda i, ids: (0, 0)),   # 1/std
            ],
            out_specs=pl.BlockSpec((tile_n, D), lambda i, ids: (i, 0)),
            scratch_shapes=[
                pltpu.VMEM((tile_n, D), emb.dtype),            # gather landing buffer
                pltpu.SemaphoreType.DMA((lookahead,)),         # ring of row-DMA sems
            ],
        )
        out = pl.pallas_call(
            _encoder_dma_gather_kernel,
            out_shape=jax.ShapeDtypeStruct((n_pad, D), emb.dtype),
            grid_spec=grid_spec,
            compiler_params=pltpu.CompilerParams(
                dimension_semantics=("parallel",),
            ),
            cost_estimate=cost,
        )(ids, emb, mean, inv_std)

    return out[:N].reshape(*orig_shape, D)


# ---------------------------------------------------------------------------
# Parameter construction (stands in for Encoder.__init__)
# ---------------------------------------------------------------------------
def build_encoder_params(key, vocab_size=512, hidden=256, num_unused=16):
    """Deterministic stand-in for the pretrained BERT embedding table and the
    used/unused id bookkeeping done in Encoder.__init__ (agg_type='features')."""
    # TODO(synk): real module loads HF pretrained weights + tokenizer vocab;
    # replaced here by a synthetic table and a synthetic [unusedX] id list.
    emb = jax.random.normal(key, (vocab_size, hidden), dtype=jnp.float32) * 0.37 + 0.05

    unused_ids = list(range(1, 1 + num_unused))
    used_ids = [0] + list(range(1 + num_unused, vocab_size))
    del unused_ids  # kept for parity with the PyTorch helper's return value

    used_rows = emb[jnp.asarray(used_ids, dtype=jnp.int32)]
    emb_mean = jnp.mean(used_rows, axis=0, keepdims=True)          # dim=0, keepdim
    emb_std = jnp.std(used_rows, axis=0, ddof=1, keepdims=True)    # torch.std (unbiased)
    return emb, emb_mean, emb_std


if __name__ == "__main__":
    key = jax.random.PRNGKey(0)
    k_emb, k_ids = jax.random.split(key)

    VOCAB, HIDDEN = 512, 256
    B, S = 2, 8

    emb, emb_mean, emb_std = build_encoder_params(k_emb, VOCAB, HIDDEN)
    input_ids = jax.random.randint(k_ids, (B, S), 0, VOCAB, dtype=jnp.int32)

    # Pure-JAX reference: normalize the whole table, then gather (PyTorch order).
    emb_norm = (emb - emb_mean) / emb_std
    ref = emb_norm[input_ids]

    # Fast path: table resident in VMEM, in-kernel row gather.
    out = encoder_forward(input_ids, emb, emb_mean, emb_std)
    out = jax.block_until_ready(out)
    assert out.shape == (B, S, HIDDEN)
    assert jnp.allclose(out, ref, atol=1e-5, rtol=1e-5)

    # Large-vocab fallback path (manual HBM row-gather DMA ring) -- exercised
    # here too so both strategies are verified on-device.
    out_dma = encoder_forward(input_ids, emb, emb_mean, emb_std,
                              force_dma_gather=True)
    out_dma = jax.block_until_ready(out_dma)
    assert out_dma.shape == (B, S, HIDDEN)
    assert jnp.allclose(out_dma, ref, atol=1e-5, rtol=1e-5)

    print("KERNEL_OK")
</pallas_src>

<mosaic_0001>
module attributes {stable_mosaic.version = 11 : i64} {
  func.func @_encoder_resident_kernel(%arg0: i32, %arg1: memref<16xi32, #tpu.memory_space<smem>>, %arg2: memref<512x256xf32, #tpu.memory_space<vmem>>, %arg3: memref<1x256xf32, #tpu.memory_space<vmem>>, %arg4: memref<1x256xf32, #tpu.memory_space<vmem>>, %arg5: memref<8x256xf32, #tpu.memory_space<vmem>>) attributes {dimension_semantics = [#tpu.dimension_semantics<parallel>], iteration_bounds = array<i64: 2>, scalar_prefetch = 1 : i64, scratch_operands = 0 : i64, tpu.core_type = #tpu.core_type<tc>, window_params = [{pipeline_mode = #tpu.pipeline_mode<synchronous>, transform_indices = @transform_0, window_bounds = array<i64: 512, 256>}, {pipeline_mode = #tpu.pipeline_mode<synchronous>, transform_indices = @transform_1, window_bounds = array<i64: 1, 256>}, {pipeline_mode = #tpu.pipeline_mode<synchronous>, transform_indices = @transform_2, window_bounds = array<i64: 1, 256>}, {transform_indices = @transform_3, window_bounds = array<i64: 8, 256>}]} {
    %c8_i32 = arith.constant 8 : i32
    %0 = arith.muli %arg0, %c8_i32 : i32
    %c0 = arith.constant 0 : index
    %c0_0 = arith.constant 0 : index
    %1 = vector.load %arg3[%c0, %c0_0] : memref<1x256xf32, #tpu.memory_space<vmem>>, vector<1x256xf32>
    %c0_1 = arith.constant 0 : index
    %c0_2 = arith.constant 0 : index
    %2 = vector.load %arg4[%c0_1, %c0_2] : memref<1x256xf32, #tpu.memory_space<vmem>>, vector<1x256xf32>
    %c0_i32 = arith.constant 0 : i32
    %3 = arith.addi %0, %c0_i32 : i32
    %4 = arith.index_cast %3 : i32 to index
    %5 = memref.load %arg1[%4] : memref<16xi32, #tpu.memory_space<smem>>
    %6 = arith.index_cast %5 : i32 to index
    %c0_3 = arith.constant 0 : index
    %7 = vector.load %arg2[%6, %c0_3] : memref<512x256xf32, #tpu.memory_space<vmem>>, vector<1x256xf32>
    %8 = arith.subf %7, %1 : vector<1x256xf32>
    %9 = arith.mulf %8, %2 : vector<1x256xf32>
    %10 = arith.index_cast %c0_i32 : i32 to index
    %c0_4 = arith.constant 0 : index
    %11 = vector.load %arg5[%10, %c0_4] : memref<8x256xf32, #tpu.memory_space<vmem>>, vector<1x256xf32>
    tpu.vector_store %arg5[%10, %c0_4], %9 {strides = array<i32>} : memref<8x256xf32, #tpu.memory_space<vmem>>, vector<1x256xf32>,
    %c1_i32 = arith.constant 1 : i32
    %12 = arith.addi %0, %c1_i32 : i32
    %13 = arith.index_cast %12 : i32 to index
    %14 = memref.load %arg1[%13] : memref<16xi32, #tpu.memory_space<smem>>
    %15 = arith.index_cast %14 : i32 to index
    %c0_5 = arith.constant 0 : index
    %16 = vector.load %arg2[%15, %c0_5] : memref<512x256xf32, #tpu.memory_space<vmem>>, vector<1x256xf32>
    %17 = arith.subf %16, %1 : vector<1x256xf32>
    %18 = arith.mulf %17, %2 : vector<1x256xf32>
    %19 = arith.index_cast %c1_i32 : i32 to index
    %c0_6 = arith.constant 0 : index
    %20 = vector.load %arg5[%19, %c0_6] : memref<8x256xf32, #tpu.memory_space<vmem>>, vector<1x256xf32>
    tpu.vector_store %arg5[%19, %c0_6], %18 {strides = array<i32>} : memref<8x256xf32, #tpu.memory_space<vmem>>, vector<1x256xf32>,
    %c2_i32 = arith.constant 2 : i32
    %21 = arith.addi %0, %c2_i32 : i32
    %22 = arith.index_cast %21 : i32 to index
    %23 = memref.load %arg1[%22] : memref<16xi32, #tpu.memory_space<smem>>
    %24 = arith.index_cast %23 : i32 to index
    %c0_7 = arith.constant 0 : index
    %25 = vector.load %arg2[%24, %c0_7] : memref<512x256xf32, #tpu.memory_space<vmem>>, vector<1x256xf32>
    %26 = arith.subf %25, %1 : vector<1x256xf32>
    %27 = arith.mulf %26, %2 : vector<1x256xf32>
    %28 = arith.index_cast %c2_i32 : i32 to index
    %c0_8 = arith.constant 0 : index
    %29 = vector.load %arg5[%28, %c0_8] : memref<8x256xf32, #tpu.memory_space<vmem>>, vector<1x256xf32>
    tpu.vector_store %arg5[%28, %c0_8], %27 {strides = array<i32>} : memref<8x256xf32, #tpu.memory_space<vmem>>, vector<1x256xf32>,
    %c3_i32 = arith.constant 3 : i32
    %30 = arith.addi %0, %c3_i32 : i32
    %31 = arith.index_cast %30 : i32 to index
    %32 = memref.load %arg1[%31] : memref<16xi32, #tpu.memory_space<smem>>
    %33 = arith.index_cast %32 : i32 to index
    %c0_9 = arith.constant 0 : index
    %34 = vector.load %arg2[%33, %c0_9] : memref<512x256xf32, #tpu.memory_space<vmem>>, vector<1x256xf32>
    %35 = arith.subf %34, %1 : vector<1x256xf32>
    %36 = arith.mulf %35, %2 : vector<1x256xf32>
    %37 = arith.index_cast %c3_i32 : i32 to index
    %c0_10 = arith.constant 0 : index
    %38 = vector.load %arg5[%37, %c0_10] : memref<8x256xf32, #tpu.memory_space<vmem>>, vector<1x256xf32>
    tpu.vector_store %arg5[%37, %c0_10], %36 {strides = array<i32>} : memref<8x256xf32, #tpu.memory_space<vmem>>, vector<1x256xf32>,
    %c4_i32 = arith.constant 4 : i32
    %39 = arith.addi %0, %c4_i32 : i32
    %40 = arith.index_cast %39 : i32 to index
    %41 = memref.load %arg1[%40] : memref<16xi32, #tpu.memory_space<smem>>
    %42 = arith.index_cast %41 : i32 to index
    %c0_11 = arith.constant 0 : index
    %43 = vector.load %arg2[%42, %c0_11] : memref<512x256xf32, #tpu.memory_space<vmem>>, vector<1x256xf32>
    %44 = arith.subf %43, %1 : vector<1x256xf32>
    %45 = arith.mulf %44, %2 : vector<1x256xf32>
    %46 = arith.index_cast %c4_i32 : i32 to index
    %c0_12 = arith.constant 0 : index
    %47 = vector.load %arg5[%46, %c0_12] : memref<8x256xf32, #tpu.memory_space<vmem>>, vector<1x256xf32>
    tpu.vector_store %arg5[%46, %c0_12], %45 {strides = array<i32>} : memref<8x256xf32, #tpu.memory_space<vmem>>, vector<1x256xf32>,
    %c5_i32 = arith.constant 5 : i32
    %48 = arith.addi %0, %c5_i32 : i32
    %49 = arith.index_cast %48 : i32 to index
    %50 = memref.load %arg1[%49] : memref<16xi32, #tpu.memory_space<smem>>
    %51 = arith.index_cast %50 : i32 to index
    %c0_13 = arith.constant 0 : index
    %52 = vector.load %arg2[%51, %c0_13] : memref<512x256xf32, #tpu.memory_space<vmem>>, vector<1x256xf32>
    %53 = arith.subf %52, %1 : vector<1x256xf32>
    %54 = arith.mulf %53, %2 : vector<1x256xf32>
    %55 = arith.index_cast %c5_i32 : i32 to index
    %c0_14 = arith.constant 0 : index
    %56 = vector.load %arg5[%55, %c0_14] : memref<8x256xf32, #tpu.memory_space<vmem>>, vector<1x256xf32>
    tpu.vector_store %arg5[%55, %c0_14], %54 {strides = array<i32>} : memref<8x256xf32, #tpu.memory_space<vmem>>, vector<1x256xf32>,
    %c6_i32 = arith.constant 6 : i32
    %57 = arith.addi %0, %c6_i32 : i32
    %58 = arith.index_cast %57 : i32 to index
    %59 = memref.load %arg1[%58] : memref<16xi32, #tpu.memory_space<smem>>
    %60 = arith.index_cast %59 : i32 to index
    %c0_15 = arith.constant 0 : index
    %61 = vector.load %arg2[%60, %c0_15] : memref<512x256xf32, #tpu.memory_space<vmem>>, vector<1x256xf32>
    %62 = arith.subf %61, %1 : vector<1x256xf32>
    %63 = arith.mulf %62, %2 : vector<1x256xf32>
    %64 = arith.index_cast %c6_i32 : i32 to index
    %c0_16 = arith.constant 0 : index
    %65 = vector.load %arg5[%64, %c0_16] : memref<8x256xf32, #tpu.memory_space<vmem>>, vector<1x256xf32>
    tpu.vector_store %arg5[%64, %c0_16], %63 {strides = array<i32>} : memref<8x256xf32, #tpu.memory_space<vmem>>, vector<1x256xf32>,
    %c7_i32 = arith.constant 7 : i32
    %66 = arith.addi %0, %c7_i32 : i32
    %67 = arith.index_cast %66 : i32 to index
    %68 = memref.load %arg1[%67] : memref<16xi32, #tpu.memory_space<smem>>
    %69 = arith.index_cast %68 : i32 to index
    %c0_17 = arith.constant 0 : index
    %70 = vector.load %arg2[%69, %c0_17] : memref<512x256xf32, #tpu.memory_space<vmem>>, vector<1x256xf32>
    %71 = arith.subf %70, %1 : vector<1x256xf32>
    %72 = arith.mulf %71, %2 : vector<1x256xf32>
    %73 = arith.index_cast %c7_i32 : i32 to index
    %c0_18 = arith.constant 0 : index
    %74 = vector.load %arg5[%73, %c0_18] : memref<8x256xf32, #tpu.memory_space<vmem>>, vector<1x256xf32>
    tpu.vector_store %arg5[%73, %c0_18], %72 {strides = array<i32>} : memref<8x256xf32, #tpu.memory_space<vmem>>, vector<1x256xf32>,
    %c8_i32_19 = arith.constant 8 : i32
    return
  }
  func.func @transform_0(%arg0: i32, %arg1: memref<16xi32, #tpu.memory_space<smem>>) -> (i32, i32) {
    %c0_i32 = arith.constant 0 : i32
    %c0_i32_0 = arith.constant 0 : i32
    %c0_i32_1 = arith.constant 0 : i32
    return %c0_i32, %c0_i32_0 : i32, i32
  }
  func.func @transform_1(%arg0: i32, %arg1: memref<16xi32, #tpu.memory_space<smem>>) -> (i32, i32) {
    %c0_i32 = arith.constant 0 : i32
    %c0_i32_0 = arith.constant 0 : i32
    %c0_i32_1 = arith.constant 0 : i32
    return %c0_i32, %c0_i32_0 : i32, i32
  }
  func.func @transform_2(%arg0: i32, %arg1: memref<16xi32, #tpu.memory_space<smem>>) -> (i32, i32) {
    %c0_i32 = arith.constant 0 : i32
    %c0_i32_0 = arith.constant 0 : i32
    %c0_i32_1 = arith.constant 0 : i32
    return %c0_i32, %c0_i32_0 : i32, i32
  }
  func.func @transform_3(%arg0: i32, %arg1: memref<16xi32, #tpu.memory_space<smem>>) -> (i32, i32) {
    %c0_i32 = arith.constant 0 : i32
    %c0_i32_0 = arith.constant 0 : i32
    return %arg0, %c0_i32 : i32, i32
  }
}

</mosaic_0001>

<llo_original>
// kernel: tpu_custom_call.1
$region0: #{tpu_custom_call.1}
  #allocation0 [shape = 'u32[]', space=smem, size = 0x4, offset = 0x4, fixed_abs, tag = 'smem constant byte address 0x4 - core index']
  #allocation1 [shape = 'u32[144,128]{1,0:T(1,128)}', space=vmem, size = 0x12000, scoped, tag = 'internal scratch']
  #allocation2 [shape = 's32[1]{0}', space=sflag, size = 0x4, scoped, tag = 'scoped memory for tpu_custom_call.1']
  #allocation3 [shape = 'u8[512]{0}', space=smem, size = 0x200, scoped, tag = 'prefetched SMEM operand 0']
  %s0 = inlined_call_operand.hbm [shape: s32[16], index: 0, kind: input, shape index: {}]
  %s1 = inlined_call_operand.hbm [shape: f32[512,256], index: 1, kind: input, shape index: {}]
  %s2 = inlined_call_operand.vmem [shape: f32[1,256], index: 2, kind: input, shape index: {}]
  %s3 = inlined_call_operand.vmem [shape: f32[1,256], index: 3, kind: input, shape index: {}]
  %s4 = inlined_call_operand.hbm [shape: f32[16,256], index: 4, kind: output, shape index: {}]
  %s5 = sld [smem:[#allocation0]]
  $region49: #{tpu_custom_call.1} parent=0
    _
  %s7 = ssub.s32 1, %s5
  %s8 = scalar_select 0, %s7, %s5
  %10 = dma.hbm_to_smem %s0, 16, [#allocation3], [#allocation2]
  %11 = dma.done [#allocation2], 16
  %12 = sfence
  $region1: #{tpu_custom_call.1} parent=0
    #allocation4 [shape = 'u8[524288]{0}', space=vmem, size = 0x80000, scoped, tag = 'input window, operand 1, single buffered']
    #allocation5 [shape = 's32[2]{0}', space=sflag, size = 0x8, scoped, tag = 'scoped memory for tpu_custom_call.1']
    #allocation6 [shape = 's32[2]{0}', space=sflag, size = 0x8, scoped, tag = 'scoped memory for tpu_custom_call.1']
    #allocation7 [shape = 'u8[16384]{0}', space=vmem, size = 0x4000, scoped, tag = 'output window, operand 0']
    %13 = vsyncpa [#allocation5], 0
    %14 = vsyncpa [#allocation6], 0
    %s15 = scalar_lea.sflag [#allocation6], 1
    %16 = vsyncpa %s15, 0
    loop: start=0, step=1, limit=4
    $region2: #{tpu_custom_call.1} parent=1 // loop_pre_header
      _
    $region3: #{tpu_custom_call.1} parent=1 // loop_header
      %s18 = sphi 0, %s22
      %p19 = scmp.ge.s32.totalorder %s18, 4
      %s26 = sphi 0, %s26
      %s28 = sphi 0, %s26
      %s29 = sphi 0, %s28
      %s43 = sphi 0, %s29
      %s47 = sphi 0, %s47
      %s49 = sphi 0, %s47
      %s50 = sphi 0, %s49
      %s64 = sphi 0, %s50
      %s68 = sphi 0, %s68
      %s70 = sphi 0, %s68
      %s71 = sphi 0, %s70
      %s85 = sphi 0, %s71
      %s91 = sphi 0, %s93
      %s94 = sphi 0, %s91
      %s95 = sphi 0, %s94
      %s111 = sphi 0, %s95
    $region4: #{tpu_custom_call.1} parent=1 // loop_header_branch
      %21 = sbr.rel (%p19) target = $region8
    $region5: #{tpu_custom_call.1} parent=1 // loop_body
      %s23 = ssub.s32 %s18, 1
      %s24 = ssub.s32 %s18, 2
      %s25 = sadd.s32 %s18, 1
      %s27 = sadd.s32 %s26, 1
      %p30 = scmp.eq.s32.totalorder %s18, 1
      %p31 = scmp.ne.s32.totalorder %s26, %s28
      %p32 = scmp.eq.s32.totalorder %s18, 0
      %p33 = por %p31, %p32
      %p34 = scmp.ne.s32.totalorder %s26, %s28
      %p35 = scmp.eq.s32.totalorder %s23, 1
      %p36 = por %p34, %p35
      %p37 = scmp.ne.s32.totalorder %s28, %s29
      %p38 = scmp.eq.s32.totalorder %s23, 0
      %p39 = por %p37, %p38
      %p40 = scmp.ne.s32.totalorder %s28, %s29
      %p41 = scmp.eq.s32.totalorder %s24, 1
      %p42 = por %p40, %p41
      %p44 = scmp.ne.s32.totalorder %s29, %s43
      %p45 = scmp.eq.s32.totalorder %s24, 0
      %p46 = por %p44, %p45
      %s48 = sadd.s32 %s47, 1
      %p51 = scmp.eq.s32.totalorder %s18, 1
      %p52 = scmp.ne.s32.totalorder %s47, %s49
      %p53 = scmp.eq.s32.totalorder %s18, 0
      %p54 = por %p52, %p53
      %p55 = scmp.ne.s32.totalorder %s47, %s49
      %p56 = scmp.eq.s32.totalorder %s23, 1
      %p57 = por %p55, %p56
      %p58 = scmp.ne.s32.totalorder %s49, %s50
      %p59 = scmp.eq.s32.totalorder %s23, 0
      %p60 = por %p58, %p59
      %p61 = scmp.ne.s32.totalorder %s49, %s50
      %p62 = scmp.eq.s32.totalorder %s24, 1
      %p63 = por %p61, %p62
      %p65 = scmp.ne.s32.totalorder %s50, %s64
      %p66 = scmp.eq.s32.totalorder %s24, 0
      %p67 = por %p65, %p66
      %s69 = sadd.s32 %s68, 1
      %p72 = scmp.eq.s32.totalorder %s18, 1
      %p73 = scmp.ne.s32.totalorder %s68, %s70
      %p74 = scmp.eq.s32.totalorder %s18, 0
      %p75 = por %p73, %p74
      %p76 = scmp.ne.s32.totalorder %s68, %s70
      %p77 = scmp.eq.s32.totalorder %s23, 1
      %p78 = por %p76, %p77
      %p79 = scmp.ne.s32.totalorder %s70, %s71
      %p80 = scmp.eq.s32.totalorder %s23, 0
      %p81 = por %p79, %p80
      %p82 = scmp.ne.s32.totalorder %s70, %s71
      %p83 = scmp.eq.s32.totalorder %s24, 1
      %p84 = por %p82, %p83
      %p86 = scmp.ne.s32.totalorder %s71, %s85
      %p87 = scmp.eq.s32.totalorder %s24, 0
      %p88 = por %p86, %p87
      %s89 = ssub.s32 %s18, %s25
      %p90 = scmp.eq.s32.totalorder %s89, 0
      %s92 = sadd.s32 %s91, 1
      %s93 = scalar_select %p90, %s91, %s92
      %p96 = pneg %p90
      %p97 = scmp.eq.s32.totalorder %s18, 1
      %p98 = por %p96, %p97
      %p99 = scmp.ne.s32.totalorder %s91, %s94
      %p100 = scmp.eq.s32.totalorder %s18, 0
      %p101 = por %p99, %p100
      %p102 = scmp.ne.s32.totalorder %s91, %s94
      %p103 = scmp.eq.s32.totalorder %s23, 1
      %p104 = por %p102, %p103
      %p105 = scmp.ne.s32.totalorder %s94, %s95
      %p106 = scmp.eq.s32.totalorder %s23, 0
      %p107 = por %p105, %p106
      %p108 = scmp.ne.s32.totalorder %s94, %s95
      %p109 = scmp.eq.s32.totalorder %s24, 1
      %p110 = por %p108, %p109
      %p112 = scmp.ne.s32.totalorder %s95, %s111
      %p113 = scmp.eq.s32.totalorder %s24, 0
      %p114 = por %p112, %p113
      %p115 = scmp.le.s32.totalorder 1, %s18
      %p116 = scmp.lt.s32.totalorder %s18, 3
      %p117 = pnand %p115, %p116
      %p118 = pneg %p117
      // Predicated region
      $region9: #{tpu_custom_call.1} parent=5 // pred_check
        _
      $region10: #{tpu_custom_call.1} parent=5 // pred_check_branch
        %120 = sbr.rel (%p117) target = $region12
      $region11: #{tpu_custom_call.1} parent=5 // pred_region
        %s121 = ssub.s32 %s18, 1
        // Predicated region
        $region13: #{tpu_custom_call.1} parent=11 // pred_check
          %p122 = pneg %p39
        $region14: #{tpu_custom_call.1} parent=11 // pred_check_branch
          %124 = sbr.rel (%p122) target = $region16
        $region15: #{tpu_custom_call.1} parent=11 // pred_region
          %s126 = ssub.s32 16384, 16384
          %127 = vsyncadd [#allocation5], %s126
          %s128 = sshll.u32 [#allocation4], 4
          %s129 = int_to_ptr.vmem [resolvable:$true] %s128
          %134 = dma.hbm_to_vmem [thread:$0]  %s1, 16384, %s129, [#allocation5], 256, 256, 16
        $region16: #{tpu_custom_call.1} parent=11 // pred_fallthru
          _
        // Predicated region
        $region17: #{tpu_custom_call.1} parent=11 // pred_check
          %p135 = pneg %p60
        $region18: #{tpu_custom_call.1} parent=11 // pred_check_branch
          %137 = sbr.rel (%p135) target = $region20
        $region19: #{tpu_custom_call.1} parent=11 // pred_region
          _
        $region20: #{tpu_custom_call.1} parent=11 // pred_fallthru
          _
        // Predicated region
        $region21: #{tpu_custom_call.1} parent=11 // pred_check
          %p138 = pneg %p81
        $region22: #{tpu_custom_call.1} parent=11 // pred_check_branch
          %140 = sbr.rel (%p138) target = $region24
        $region23: #{tpu_custom_call.1} parent=11 // pred_region
          _
        $region24: #{tpu_custom_call.1} parent=11 // pred_fallthru
          _
      $region12: #{tpu_custom_call.1} parent=5 // pred_fallthru
        _
      %p141 = scmp.lt.s32.totalorder %s18, 2
      // Predicated region
      $region25: #{tpu_custom_call.1} parent=5 // pred_check
        %p142 = pneg %p141
      $region26: #{tpu_custom_call.1} parent=5 // pred_check_branch
        %144 = sbr.rel (%p142) target = $region28
      $region27: #{tpu_custom_call.1} parent=5 // pred_region
        _
      $region28: #{tpu_custom_call.1} parent=5 // pred_fallthru
        _
      %p145 = scmp.le.s32.totalorder 1, %s18
      %p146 = scmp.lt.s32.totalorder %s18, 3
      %p147 = pnand %p145, %p146
      %p148 = pneg %p147
      // Predicated region
      $region29: #{tpu_custom_call.1} parent=5 // pred_check
        _
      $region30: #{tpu_custom_call.1} parent=5 // pred_check_branch
        %150 = sbr.rel (%p147) target = $region32
      $region31: #{tpu_custom_call.1} parent=5 // pred_region
        %s151 = ssub.s32 %s18, 1
        // Predicated region
        $region33: #{tpu_custom_call.1} parent=31 // pred_check
          %p152 = pneg %p39
        $region34: #{tpu_custom_call.1} parent=31 // pred_check_branch
          %154 = sbr.rel (%p152) target = $region36
        $region35: #{tpu_custom_call.1} parent=31 // pred_region
          %155 = dma.done [#allocation5], 16384
        $region36: #{tpu_custom_call.1} parent=31 // pred_fallthru
          _
        %p156 = pneg %p39
        %p157 = pneg %p36
        %p158 = pneg %p60
        %p159 = pneg %p57
        %p160 = pneg %p81
        %p161 = pneg %p78
        %p162 = pneg %p107
        %p163 = pneg %p104
        %s164 = sand.u32 %s94, 1
        %s165 = scalar_lea.sflag [#allocation6], %s164
        %s166 = sand.u32 %s94, 1
        %s167 = smul.addr %s166, 16
        %s168 = scalar_lea.vmem [#allocation7], %s167
        %s169 = smul.u32 %s23, 8
        %v170 = vld [vmem:[%s2] sm:$0x3]
        %v171 = vld [vmem:[%s3] sm:$0x3]
        %s172 = sld [smem:[#allocation3 + %s169]]
        %s173 = sshra.s32 %s172, 3
        %s174 = sand.u32 %s172, 7
        %s175 = sshra.s32 %s172, 3
        %s176 = sand.u32 %s172, 7
        %s177 = smul.u32 %s173, 2
        %s178 = smul.u32 %s177, 8
        %s179 = sadd.s32 %s178, %s176
        %s180 = scalar_lea.vmem [#allocation4], %s179
        %v181 = vld [vmem:[%s180] ss:$8 sm:$0x3]
        %v182 = vsub.f32 %v181, %v170
        %v183 = vmul.f32 %v182, %v171
        %v184 = vlaneseq
        %vm185 = vcmp.ge.s32.totalorder %v184, 0
        %vm186 = vcmp.lt.s32.totalorder %v184, 256
        %vm187 = vmand %vm185, %vm186
        %188 = vst.msk [vmem:[%s168] ss:$8 sm:$0x3] %vm187, %v183
        %189 = vst.msk [vmem:[%s168] ss:$8 sm:$0x0] %vm187, %v183
        %s190 = sadd.s32 %s169, 1
        %s191 = sld [smem:[#allocation3 + %s190]]
        %s192 = sshra.s32 %s191, 3
        %s193 = sand.u32 %s191, 7
        %s194 = sshra.s32 %s191, 3
        %s195 = sand.u32 %s191, 7
        %s196 = smul.u32 %s192, 2
        %s197 = smul.u32 %s196, 8
        %s198 = sadd.s32 %s197, %s195
        %s199 = scalar_lea.vmem [#allocation4], %s198
        %v200 = vld [vmem:[%s199] ss:$8 sm:$0x3]
        %v201 = vsub.f32 %v200, %v170
        %v202 = vmul.f32 %v201, %v171
        %s203 = scalar_lea.vmem %s168, 1 [#allocation7]
        %204 = vst.msk [vmem:[%s203] ss:$8 sm:$0x3] %vm187, %v202
        %205 = vst.msk [vmem:[%s203] ss:$8 sm:$0x0] %vm187, %v202
        %s206 = sadd.s32 %s169, 2
        %s207 = sld [smem:[#allocation3 + %s206]]
        %s208 = sshra.s32 %s207, 3
        %s209 = sand.u32 %s207, 7
        %s210 = sshra.s32 %s207, 3
        %s211 = sand.u32 %s207, 7
        %s212 = smul.u32 %s208, 2
        %s213 = smul.u32 %s212, 8
        %s214 = sadd.s32 %s213, %s211
        %s215 = scalar_lea.vmem [#allocation4], %s214
        %v216 = vld [vmem:[%s215] ss:$8 sm:$0x3]
        %v217 = vsub.f32 %v216, %v170
        %v218 = vmul.f32 %v217, %v171
        %s219 = scalar_lea.vmem %s168, 2 [#allocation7]
        %220 = vst.msk [vmem:[%s219] ss:$8 sm:$0x3] %vm187, %v218
        %221 = vst.msk [vmem:[%s219] ss:$8 sm:$0x0] %vm187, %v218
        %s222 = sadd.s32 %s169, 3
        %s223 = sld [smem:[#allocation3 + %s222]]
        %s224 = sshra.s32 %s223, 3
        %s225 = sand.u32 %s223, 7
        %s226 = sshra.s32 %s223, 3
        %s227 = sand.u32 %s223, 7
        %s228 = smul.u32 %s224, 2
        %s229 = smul.u32 %s228, 8
        %s230 = sadd.s32 %s229, %s227
        %s231 = scalar_lea.vmem [#allocation4], %s230
        %v232 = vld [vmem:[%s231] ss:$8 sm:$0x3]
        %v233 = vsub.f32 %v232, %v170
        %v234 = vmul.f32 %v233, %v171
        %s235 = scalar_lea.vmem %s168, 3 [#allocation7]
        %236 = vst.msk [vmem:[%s235] ss:$8 sm:$0x3] %vm187, %v234
        %237 = vst.msk [vmem:[%s235] ss:$8 sm:$0x0] %vm187, %v234
        %s238 = sadd.s32 %s169, 4
        %s239 = sld [smem:[#allocation3 + %s238]]
        %s240 = sshra.s32 %s239, 3
        %s241 = sand.u32 %s239, 7
        %s242 = sshra.s32 %s239, 3
        %s243 = sand.u32 %s239, 7
        %s244 = smul.u32 %s240, 2
        %s245 = smul.u32 %s244, 8
        %s246 = sadd.s32 %s245, %s243
        %s247 = scalar_lea.vmem [#allocation4], %s246
        %v248 = vld [vmem:[%s247] ss:$8 sm:$0x3]
        %v249 = vsub.f32 %v248, %v170
        %v250 = vmul.f32 %v249, %v171
        %s251 = scalar_lea.vmem %s168, 4 [#allocation7]
        %252 = vst.msk [vmem:[%s251] ss:$8 sm:$0x3] %vm187, %v250
        %253 = vst.msk [vmem:[%s251] ss:$8 sm:$0x0] %vm187, %v250
        %s254 = sadd.s32 %s169, 5
        %s255 = sld [smem:[#allocation3 + %s254]]
        %s256 = sshra.s32 %s255, 3
        %s257 = sand.u32 %s255, 7
        %s258 = sshra.s32 %s255, 3
        %s259 = sand.u32 %s255, 7
        %s260 = smul.u32 %s256, 2
        %s261 = smul.u32 %s260, 8
        %s262 = sadd.s32 %s261, %s259
        %s263 = scalar_lea.vmem [#allocation4], %s262
        %v264 = vld [vmem:[%s263] ss:$8 sm:$0x3]
        %v265 = vsub.f32 %v264, %v170
        %v266 = vmul.f32 %v265, %v171
        %s267 = scalar_lea.vmem %s168, 5 [#allocation7]
        %268 = vst.msk [vmem:[%s267] ss:$8 sm:$0x3] %vm187, %v266
        %269 = vst.msk [vmem:[%s267] ss:$8 sm:$0x0] %vm187, %v266
        %s270 = sadd.s32 %s169, 6
        %s271 = sld [smem:[#allocation3 + %s270]]
        %s272 = sshra.s32 %s271, 3
        %s273 = sand.u32 %s271, 7
        %s274 = sshra.s32 %s271, 3
        %s275 = sand.u32 %s271, 7
        %s276 = smul.u32 %s272, 2
        %s277 = smul.u32 %s276, 8
        %s278 = sadd.s32 %s277, %s275
        %s279 = scalar_lea.vmem [#allocation4], %s278
        %v280 = vld [vmem:[%s279] ss:$8 sm:$0x3]
        %v281 = vsub.f32 %v280, %v170
        %v282 = vmul.f32 %v281, %v171
        %s283 = scalar_lea.vmem %s168, 6 [#allocation7]
        %284 = vst.msk [vmem:[%s283] ss:$8 sm:$0x3] %vm187, %v282
        %285 = vst.msk [vmem:[%s283] ss:$8 sm:$0x0] %vm187, %v282
        %s286 = sadd.s32 %s169, 7
        %s287 = sld [smem:[#allocation3 + %s286]]
        %s288 = sshra.s32 %s287, 3
        %s289 = sand.u32 %s287, 7
        %s290 = sshra.s32 %s287, 3
        %s291 = sand.u32 %s287, 7
        %s292 = smul.u32 %s288, 2
        %s293 = smul.u32 %s292, 8
        %s294 = sadd.s32 %s293, %s291
        %s295 = scalar_lea.vmem [#allocation4], %s294
        %v296 = vld [vmem:[%s295] ss:$8 sm:$0x3]
        %v297 = vsub.f32 %v296, %v170
        %v298 = vmul.f32 %v297, %v171
        %s299 = scalar_lea.vmem %s168, 7 [#allocation7]
        %300 = vst.msk [vmem:[%s299] ss:$8 sm:$0x3] %vm187, %v298
        %301 = vst.msk [vmem:[%s299] ss:$8 sm:$0x0] %vm187, %v298
        %s302 = sand.u32 %s94, 1
        %s303 = scalar_lea.sflag [#allocation6], %s302
        %s304 = sand.u32 %s94, 1
        %s305 = smul.addr %s304, 16
        %s306 = scalar_lea.vmem [#allocation7], %s305
        // Predicated region
        $region37: #{tpu_custom_call.1} parent=31 // pred_check
          %p307 = pneg %p104
        $region38: #{tpu_custom_call.1} parent=31 // pred_check_branch
          %309 = sbr.rel (%p307) target = $region40
        $region39: #{tpu_custom_call.1} parent=31 // pred_region
          %s311 = ssub.s32 256, 256
          %312 = vsyncadd %s303, %s311
          %s313 = smul.addr %s23, 2
          %s314 = smul.addr %s313, 128
          %s315 = scalar_lea.hbm %s4, %s314
          %s317 = sshll.u32 %s306, 4
          %s318 = int_to_ptr.vmem [resolvable:$true] %s317
          %320 = dma.vmem_to_hbm [thread:$0]  %s318, 256, %s315, %s303
        $region40: #{tpu_custom_call.1} parent=31 // pred_fallthru
          _
      $region32: #{tpu_custom_call.1} parent=5 // pred_fallthru
        _
      %p321 = scmp.le.s32.totalorder 2, %s18
      // Predicated region
      $region41: #{tpu_custom_call.1} parent=5 // pred_check
        %p322 = pneg %p321
      $region42: #{tpu_custom_call.1} parent=5 // pred_check_branch
        %324 = sbr.rel (%p322) target = $region44
      $region43: #{tpu_custom_call.1} parent=5 // pred_region
        %s325 = ssub.s32 %s18, 2
        // Predicated region
        $region45: #{tpu_custom_call.1} parent=43 // pred_check
          %p326 = pneg %p110
        $region46: #{tpu_custom_call.1} parent=43 // pred_check_branch
          %328 = sbr.rel (%p326) target = $region48
        $region47: #{tpu_custom_call.1} parent=43 // pred_region
          %s329 = sand.u32 %s95, 1
          %s330 = scalar_lea.sflag [#allocation6], %s329
          %s331 = sand.u32 %s95, 1
          %s332 = smul.addr %s331, 16
          %s333 = scalar_lea.vmem [#allocation7], %s332
          %334 = dma.done %s330, 256
        $region48: #{tpu_custom_call.1} parent=43 // pred_fallthru
          _
      $region44: #{tpu_custom_call.1} parent=5 // pred_fallthru
        _
    $region6: #{tpu_custom_call.1} parent=1 // loop_footer
      %s22 = sadd.s32 1, %s18
    $region7: #{tpu_custom_call.1} parent=1 // loop_footer_branch
      %17 = sbr.rel target = $region3
    $region8: #{tpu_custom_call.1} parent=1 // loop_exit
      _
    %335 = vsyncpa [#allocation5], 1
    %s336 = scalar_lea.sflag [#allocation5], 1
    %337 = vsyncpa %s336, 1
    %338 = vsyncpa [#allocation6], 1
    %s339 = scalar_lea.sflag [#allocation6], 1
    %340 = vsyncpa %s339, 1

</llo_original>
